<compile_context>
chip_gen: v7x
topology: tpu7x:2x2x1
jax: 0.10.0
libtpu: 0.0.40
codegen_flags: <defaults>
</compile_context>

<pallas_src>
import functools

import jax
import jax.numpy as jnp
import numpy as np
from jax.experimental import pallas as pl
from jax.experimental.pallas import tpu as pltpu


def _round_up(x, m):
    return ((x + m - 1) // m) * m


def _dstcn_block_kernel(x_ref, wp_ref, ws_ref, o_ref, sum_ref, ssq_ref, *,
                        kernel_size, stride, dilation, tt, t_out, c_in, skip,
                        eps, single_pass, pw_dtype):
    """Grid = (batch, n_pass, n_time_tiles).

    x_ref:   (1, 1, stride, C_in, Lt)  phase-decomposed, halo'd input tile
    wp_ref:  (C_in, K+4)  packed [dw_0..dw_{K-1} | bias | gamma | beta | alpha]
    ws_ref:  (C_out, C_in) pointwise (1x1 conv) weight
    o_ref:   (1, C_out, TT) output tile (time padded up to a multiple of TT)
    sum_ref, ssq_ref: (1, 1) f32 scratch -- streaming GroupNorm statistics
    """
    K = kernel_size
    p = pl.program_id(1)
    nt = pl.program_id(2)

    # ---- depthwise conv: each tap is a contiguous, statically-offset lane slice ----
    acc = None
    skip_acc = None
    for k in range(K):
        off = k * dilation
        r, q = off % stride, off // stride          # phase / within-phase offset (static)
        xs = x_ref[0, 0, r, :, q:q + tt].astype(jnp.float32)      # (C_in, TT)
        wk = wp_ref[:, k:k + 1].astype(jnp.float32)               # (C_in, 1)
        acc = wk * xs if acc is None else acc + wk * xs
        if skip:  # MaxPool1d skip path uses exactly the same taps
            skip_acc = xs if skip_acc is None else jnp.maximum(skip_acc, xs)
    y = acc + wp_ref[:, K:K + 1].astype(jnp.float32)              # + depthwise bias

    # ---- PReLU (single shared alpha, replicated per channel inside wp) ----
    alpha = wp_ref[:, K + 3:K + 4].astype(jnp.float32)
    y = jnp.where(y > 0, y, alpha * y)

    # validity mask for the padded tail of the time axis (last tile may be partial)
    t_idx = nt * tt + jax.lax.broadcasted_iota(jnp.int32, (1, tt), 1)
    valid = t_idx < t_out
    n_elems = float(c_in * t_out)

    def _normalize_and_project(mean, rstd):
        gamma = wp_ref[:, K + 1:K + 2].astype(jnp.float32)
        beta = wp_ref[:, K + 2:K + 3].astype(jnp.float32)
        y_n = (y - mean) * rstd * gamma + beta
        # pointwise (1x1) conv == channel matmul on the MXU; N dim = TT (lane dense)
        out = jnp.dot(ws_ref[...].astype(pw_dtype), y_n.astype(pw_dtype),
                      preferred_element_type=jnp.float32)
        if skip:
            out = out + skip_acc
        o_ref[0] = out.astype(o_ref.dtype)

    if single_pass:
        # whole sequence fits in one tile: fused stats + normalize + project
        y_m = jnp.where(valid, y, 0.0)
        s1 = jnp.sum(y_m)
        s2 = jnp.sum(y_m * y_m)
        mean = s1 / n_elems
        var = jnp.maximum(s2 / n_elems - mean * mean, 0.0)
        _normalize_and_project(mean, jax.lax.rsqrt(var + eps))
    else:
        @pl.when(p == 0)
        def _stats_pass():
            # single traversal: accumulate sum and sum-of-squares
            y_m = jnp.where(valid, y, 0.0)

            @pl.when(nt == 0)
            def _init():
                sum_ref[...] = jnp.zeros_like(sum_ref)
                ssq_ref[...] = jnp.zeros_like(ssq_ref)

            sum_ref[...] = sum_ref[...] + jnp.sum(y_m)
            ssq_ref[...] = ssq_ref[...] + jnp.sum(y_m * y_m)

        @pl.when(p == 1)
        def _apply_pass():
            mean = sum_ref[...] / n_elems                          # (1, 1)
            var = jnp.maximum(ssq_ref[...] / n_elems - mean * mean, 0.0)
            _normalize_and_project(mean, jax.lax.rsqrt(var + eps))


def dstcn_block(x, params, *, kernel_size, stride, dilation=1, skip=False,
                eps=1e-8, time_tile=512, pointwise_dtype=jnp.float32):
    """One DSTCNBlock: depthwise conv -> PReLU -> GroupNorm(1) -> 1x1 conv (+ skip)."""
    b, c_in, t_in = x.shape
    wp, ws = params
    c_out = ws.shape[0]
    K, s, d = kernel_size, stride, dilation
    assert wp.shape == (c_in, K + 4)
    if skip:
        assert c_out == c_in
    t_out = (t_in - d * (K - 1) - 1) // s + 1
    assert t_out >= 1

    # ---- choose a lane-dense time tile (multiple of 128) that fits VMEM ----
    q_max = (d * (K - 1)) // s

    def vmem_estimate(tile):
        lt_ = tile + q_max
        x_tile = s * _round_up(c_in, 8) * _round_up(lt_, 128) * 4
        o_tile = _round_up(c_out, 8) * _round_up(tile, 128) * 4
        w_b = (_round_up(c_in, 8) * 128 + _round_up(c_out, 8) * _round_up(c_in, 128)) * 4
        return 2 * (x_tile + o_tile + w_b) + (1 << 20)   # inputs/outputs double-buffered

    tt = min(_round_up(t_out, 128), _round_up(max(time_tile, 128), 128))
    while tt > 128 and vmem_estimate(tt) > (24 << 20):   # keep v7x (64 MiB VMEM) headroom
        tt -= 128
    nt = (t_out + tt - 1) // tt
    lt = tt + q_max
    single_pass = nt == 1
    n_pass = 1 if single_pass else 2

    # ---- wrapper-side relayout: phase-decomposed, halo'd, lane-dense tiles ----
    # x_tiles[b, j, r, c, m] = x[b, c, j*tt*s + m*s + r]  (zero padded past t_in), so
    # tap k (offset k*dilation = q*s + r) is the contiguous slice [q, q+tt) of phase r
    # -> no strided lane access inside the kernel.
    j_i = np.arange(nt, dtype=np.int32)[:, None, None]
    r_i = np.arange(s, dtype=np.int32)[None, :, None]
    m_i = np.arange(lt, dtype=np.int32)[None, None, :]
    gather_idx = j_i * (tt * s) + m_i * s + r_i                    # (nt, s, lt), static
    t_need = (nt - 1) * tt * s + (lt - 1) * s + (s - 1) + 1
    if t_need > t_in:
        x = jnp.pad(x, ((0, 0), (0, 0), (0, t_need - t_in)))
    x_tiles = jnp.transpose(x[:, :, gather_idx], (0, 2, 3, 1, 4))  # (B, nt, s, C, lt)

    kernel = functools.partial(
        _dstcn_block_kernel, kernel_size=K, stride=s, dilation=d, tt=tt,
        t_out=t_out, c_in=c_in, skip=skip, eps=eps, single_pass=single_pass,
        pw_dtype=pointwise_dtype)

    t_pad = nt * tt
    vmem_bytes = int(min(max(3 * vmem_estimate(tt), 16 << 20), 60 << 20))

    out_padded = pl.pallas_call(
        kernel,
        out_shape=jax.ShapeDtypeStruct((b, c_out, t_pad), x.dtype),
        grid=(b, n_pass, nt),
        in_specs=[
            pl.BlockSpec((1, 1, s, c_in, lt), lambda bi, p, j: (bi, j, 0, 0, 0)),
            pl.BlockSpec((c_in, K + 4), lambda bi, p, j: (0, 0)),   # packed params
            pl.BlockSpec((c_out, c_in), lambda bi, p, j: (0, 0)),   # 1x1 conv weight
        ],
        # During the stats pass (p == 0) the output index is pinned to tile 0 so no
        # stale block is flushed; dense full-tile stores happen only during p == 1.
        out_specs=pl.BlockSpec((1, c_out, tt), lambda bi, p, j: (bi, 0, j * p)),
        scratch_shapes=[pltpu.VMEM((1, 1), jnp.float32),
                        pltpu.VMEM((1, 1), jnp.float32)],
        compiler_params=pltpu.CompilerParams(
            dimension_semantics=("parallel", "arbitrary", "arbitrary"),
            vmem_limit_bytes=vmem_bytes),
    )(x_tiles, wp, ws)

    return out_padded[:, :, :t_out]


def init_convds(key, ds_layers, in_dim):
    """Deterministic parameters for ConvDS (mirrors the PyTorch module structure)."""
    layers = []
    in_d = in_dim
    skip = False
    for (dim, k, stride) in ds_layers:
        if in_d == dim and dim == 512:
            skip = True
        key, k1, k2, k3 = jax.random.split(key, 4)
        dw = 0.1 * jax.random.normal(k1, (in_d, k), dtype=jnp.float32)     # depthwise weight
        db = 0.1 * jax.random.normal(k2, (in_d, 1), dtype=jnp.float32)     # depthwise bias
        gamma = jnp.ones((in_d, 1), dtype=jnp.float32)                     # GroupNorm weight
        beta = jnp.zeros((in_d, 1), dtype=jnp.float32)                     # GroupNorm bias
        alpha = jnp.full((in_d, 1), 0.25, dtype=jnp.float32)               # PReLU shared alpha
        wp = jnp.concatenate([dw, db, gamma, beta, alpha], axis=1)         # (in_d, k+4)
        ws = 0.1 * jax.random.normal(k3, (dim, in_d), dtype=jnp.float32)   # 1x1 conv weight
        cfg = dict(kernel_size=k, stride=stride, dilation=1, skip=skip, eps=1e-8)
        layers.append(((wp, ws), cfg))
        in_d = dim
        skip = False
    return layers


def convds_forward(x, layers, *, time_tile=512):
    for params, cfg in layers:
        x = dstcn_block(x, params, time_tile=time_tile, **cfg)
    return x


# ---------------------------- pure-JAX reference ------------------------------
def _ref_block(x, params, *, kernel_size, stride, dilation=1, skip=False, eps=1e-8):
    wp, ws = params
    K = kernel_size
    dw, db = wp[:, :K], wp[:, K]
    gamma, beta, alpha = wp[:, K + 1], wp[:, K + 2], wp[:, K + 3]
    _, _, t_in = x.shape
    t_out = (t_in - dilation * (K - 1) - 1) // stride + 1
    taps = jnp.stack(
        [x[:, :, k * dilation: k * dilation + stride * (t_out - 1) + 1: stride]
         for k in range(K)], axis=0)                                 # (K, B, C, T_out)
    y = jnp.einsum('kbct,ck->bct', taps, dw) + db[None, :, None]
    y = jnp.where(y > 0, y, alpha[None, :, None] * y)
    mean = jnp.mean(y, axis=(1, 2), keepdims=True)
    var = jnp.mean((y - mean) ** 2, axis=(1, 2), keepdims=True)
    y = (y - mean) * jax.lax.rsqrt(var + eps)
    y = y * gamma[None, :, None] + beta[None, :, None]
    out = jnp.einsum('oc,bct->bot', ws, y)
    if skip:
        out = out + jnp.max(taps, axis=0)
    return out


def _ref_forward(x, layers):
    for params, cfg in layers:
        x = _ref_block(x, params, **cfg)
    return x


if __name__ == "__main__":
    def run_case(seed, ds_layers, in_dim, batch, t_in, time_tile=512):
        key = jax.random.PRNGKey(seed)
        key, xkey = jax.random.split(key)
        x = jax.random.normal(xkey, (batch, in_dim, t_in), dtype=jnp.float32)
        layers = init_convds(key, ds_layers, in_dim)
        out = jax.block_until_ready(convds_forward(x, layers, time_tile=time_tile))
        ref = jax.block_until_ready(_ref_forward(x, layers))
        assert out.shape == ref.shape, (out.shape, ref.shape)
        # loose tolerance accommodates the TPU MXU's default (bf16-input) matmul
        # precision in both the kernel and the jnp reference
        np.testing.assert_allclose(np.asarray(out), np.asarray(ref),
                                   rtol=5e-2, atol=5e-2)
        return out

    # 1) small demo config (single-pass fast path): T 32 -> 30 -> 14
    out = run_case(0, ds_layers=[(8, 3, 1), (16, 3, 2)], in_dim=4, batch=2, t_in=32)
    assert out.shape == (2, 16, 14), out.shape

    # 2) longer sequence with a small time tile -> exercises streaming (two-pass)
    #    GroupNorm, partial last tiles and stride-2 phase decomposition
    out = run_case(1, ds_layers=[(8, 3, 1), (16, 3, 2)], in_dim=4, batch=2,
                   t_in=300, time_tile=128)
    assert out.shape == (2, 16, 148), out.shape

    # 3) 512 -> 512 layer triggers the MaxPool1d skip connection
    out = run_case(2, ds_layers=[(512, 3, 2)], in_dim=512, batch=1, t_in=16)
    assert out.shape == (1, 512, 7), out.shape

    print("KERNEL_OK")
</pallas_src>

<mosaic_0001>
module attributes {stable_mosaic.version = 11 : i64} {
  func.func @_dstcn_block_kernel(%arg0: i32, %arg1: i32, %arg2: i32, %arg3: memref<1x1x1x4x130xf32, #tpu.memory_space<vmem>>, %arg4: memref<4x7xf32, #tpu.memory_space<vmem>>, %arg5: memref<8x4xf32, #tpu.memory_space<vmem>>, %arg6: memref<1x8x128xf32, #tpu.memory_space<vmem>>, %arg7: memref<1x1xf32, #tpu.memory_space<vmem>>, %arg8: memref<1x1xf32, #tpu.memory_space<vmem>>) attributes {dimension_semantics = [#tpu.dimension_semantics<parallel>, #tpu.dimension_semantics<arbitrary>, #tpu.dimension_semantics<arbitrary>], iteration_bounds = array<i64: 2, 1, 1>, scalar_prefetch = 0 : i64, scratch_operands = 2 : i64, tpu.core_type = #tpu.core_type<tc>, window_params = [{transform_indices = @transform_0, window_bounds = array<i64: 1, 1, 1, 4, 130>}, {pipeline_mode = #tpu.pipeline_mode<synchronous>, transform_indices = @transform_1, window_bounds = array<i64: 4, 7>}, {pipeline_mode = #tpu.pipeline_mode<synchronous>, transform_indices = @transform_2, window_bounds = array<i64: 8, 4>}, {transform_indices = @transform_3, window_bounds = array<i64: 1, 8, 128>}]} {
    %c0 = arith.constant 0 : index
    %c0_0 = arith.constant 0 : index
    %c0_1 = arith.constant 0 : index
    %c0_2 = arith.constant 0 : index
    %c0_3 = arith.constant 0 : index
    %0 = vector.load %arg3[%c0, %c0_0, %c0_1, %c0_2, %c0_3] : memref<1x1x1x4x130xf32, #tpu.memory_space<vmem>>, vector<1x1x1x4x128xf32>
    %1 = vector.shape_cast %0 : vector<1x1x1x4x128xf32> to vector<4x128xf32>
    %c0_4 = arith.constant 0 : index
    %c0_5 = arith.constant 0 : index
    %2 = vector.load %arg4[%c0_4, %c0_5] : memref<4x7xf32, #tpu.memory_space<vmem>>, vector<4x1xf32>
    %3 = vector.broadcast %2 : vector<4x1xf32> to vector<4x128xf32>
    %4 = arith.mulf %3, %1 : vector<4x128xf32>
    %c0_6 = arith.constant 0 : index
    %c0_7 = arith.constant 0 : index
    %c0_8 = arith.constant 0 : index
    %c0_9 = arith.constant 0 : index
    %c1 = arith.constant 1 : index
    %5 = vector.load %arg3[%c0_6, %c0_7, %c0_8, %c0_9, %c1] : memref<1x1x1x4x130xf32, #tpu.memory_space<vmem>>, vector<1x1x1x4x128xf32>
    %6 = vector.shape_cast %5 : vector<1x1x1x4x128xf32> to vector<4x128xf32>
    %c0_10 = arith.constant 0 : index
    %c1_11 = arith.constant 1 : index
    %7 = vector.load %arg4[%c0_10, %c1_11] : memref<4x7xf32, #tpu.memory_space<vmem>>, vector<4x1xf32>
    %8 = vector.broadcast %7 : vector<4x1xf32> to vector<4x128xf32>
    %9 = arith.mulf %8, %6 : vector<4x128xf32>
    %10 = arith.addf %4, %9 : vector<4x128xf32>
    %c0_12 = arith.constant 0 : index
    %c0_13 = arith.constant 0 : index
    %c0_14 = arith.constant 0 : index
    %c0_15 = arith.constant 0 : index
    %c2 = arith.constant 2 : index
    %11 = vector.load %arg3[%c0_12, %c0_13, %c0_14, %c0_15, %c2] : memref<1x1x1x4x130xf32, #tpu.memory_space<vmem>>, vector<1x1x1x4x128xf32>
    %12 = vector.shape_cast %11 : vector<1x1x1x4x128xf32> to vector<4x128xf32>
    %c0_16 = arith.constant 0 : index
    %c2_17 = arith.constant 2 : index
    %13 = vector.load %arg4[%c0_16, %c2_17] : memref<4x7xf32, #tpu.memory_space<vmem>>, vector<4x1xf32>
    %14 = vector.broadcast %13 : vector<4x1xf32> to vector<4x128xf32>
    %15 = arith.mulf %14, %12 : vector<4x128xf32>
    %16 = arith.addf %10, %15 : vector<4x128xf32>
    %c0_18 = arith.constant 0 : index
    %c3 = arith.constant 3 : index
    %17 = vector.load %arg4[%c0_18, %c3] : memref<4x7xf32, #tpu.memory_space<vmem>>, vector<4x1xf32>
    %18 = vector.broadcast %17 : vector<4x1xf32> to vector<4x128xf32>
    %19 = arith.addf %16, %18 : vector<4x128xf32>
    %c0_19 = arith.constant 0 : index
    %c6 = arith.constant 6 : index
    %20 = vector.load %arg4[%c0_19, %c6] : memref<4x7xf32, #tpu.memory_space<vmem>>, vector<4x1xf32>
    %cst = arith.constant 0.000000e+00 : f32
    %21 = vector.broadcast %cst : f32 to vector<4x128xf32>
    %22 = arith.cmpf ogt, %19, %21 : vector<4x128xf32>
    %23 = vector.broadcast %20 : vector<4x1xf32> to vector<4x128xf32>
    %24 = arith.mulf %23, %19 : vector<4x128xf32>
    %25 = arith.select %22, %19, %24 : vector<4x128xi1>, vector<4x128xf32>
    %c128_i32 = arith.constant 128 : i32
    %26 = arith.muli %arg2, %c128_i32 : i32
    %27 = tpu.iota {dimensions = array<i32: 1>} : vector<1x128xi32>
    %28 = vector.broadcast %26 : i32 to vector<1x128xi32>
    %29 = arith.addi %28, %27 : vector<1x128xi32>
    %c30_i32 = arith.constant 30 : i32
    %30 = vector.broadcast %c30_i32 : i32 to vector<1x128xi32>
    %31 = arith.cmpi slt, %29, %30 : vector<1x128xi32>
    %cst_20 = arith.constant 0.000000e+00 : f32
    %32 = vector.shape_cast %31 : vector<1x128xi1> to vector<1x128xi1>
    %33 = vector.broadcast %32 : vector<1x128xi1> to vector<4x128xi1>
    %34 = vector.broadcast %cst_20 : f32 to vector<4x128xf32>
    %35 = arith.select %33, %25, %34 : vector<4x128xi1>, vector<4x128xf32>
    %36 = vector.shape_cast %35 : vector<4x128xf32> to vector<1x4x128xf32>
    %cst_21 = arith.constant dense<0.000000e+00> : vector<1xf32>
    %37 = vector.multi_reduction <add>, %36, %cst_21 [1, 2] : vector<1x4x128xf32> to vector<1xf32>
    %38 = vector.shape_cast %37 : vector<1xf32> to vector<1x1x1xf32>
    %39 = vector.extract %38[0, 0, 0] : f32 from vector<1x1x1xf32>
    %40 = arith.mulf %35, %35 : vector<4x128xf32>
    %41 = vector.shape_cast %40 : vector<4x128xf32> to vector<1x4x128xf32>
    %cst_22 = arith.constant dense<0.000000e+00> : vector<1xf32>
    %42 = vector.multi_reduction <add>, %41, %cst_22 [1, 2] : vector<1x4x128xf32> to vector<1xf32>
    %43 = vector.shape_cast %42 : vector<1xf32> to vector<1x1x1xf32>
    %44 = vector.extract %43[0, 0, 0] : f32 from vector<1x1x1xf32>
    %cst_23 = arith.constant 1.200000e+02 : f32
    %45 = arith.divf %39, %cst_23 : f32
    %cst_24 = arith.constant 1.200000e+02 : f32
    %46 = arith.divf %44, %cst_24 : f32
    %47 = arith.mulf %45, %45 : f32
    %48 = arith.subf %46, %47 : f32
    %cst_25 = arith.constant 0.000000e+00 : f32
    %49 = arith.maximumf %48, %cst_25 : f32
    %cst_26 = arith.constant 9.99999993E-9 : f32
    %50 = arith.addf %49, %cst_26 : f32
    %51 = math.rsqrt %50 : f32
    %c0_27 = arith.constant 0 : index
    %c4 = arith.constant 4 : index
    %52 = vector.load %arg4[%c0_27, %c4] : memref<4x7xf32, #tpu.memory_space<vmem>>, vector<4x1xf32>
    %c0_28 = arith.constant 0 : index
    %c5 = arith.constant 5 : index
    %53 = vector.load %arg4[%c0_28, %c5] : memref<4x7xf32, #tpu.memory_space<vmem>>, vector<4x1xf32>
    %54 = vector.broadcast %45 : f32 to vector<4x128xf32>
    %55 = arith.subf %25, %54 : vector<4x128xf32>
    %56 = vector.broadcast %51 : f32 to vector<4x128xf32>
    %57 = arith.mulf %55, %56 : vector<4x128xf32>
    %58 = vector.broadcast %52 : vector<4x1xf32> to vector<4x128xf32>
    %59 = arith.mulf %57, %58 : vector<4x128xf32>
    %60 = vector.broadcast %53 : vector<4x1xf32> to vector<4x128xf32>
    %61 = arith.addf %59, %60 : vector<4x128xf32>
    %c0_29 = arith.constant 0 : index
    %c0_30 = arith.constant 0 : index
    %62 = vector.load %arg5[%c0_29, %c0_30] : memref<8x4xf32, #tpu.memory_space<vmem>>, vector<8x4xf32>
    %cst_31 = arith.constant dense<0.000000e+00> : vector<8x128xf32>
    %63 = tpu.matmul %62, %61, %cst_31 {dimension_numbers = #tpu.dot_dimension_numbers<[1], [0], [0], [1], [0, 0, 1, 1], [], []>} : vector<8x4xf32>, vector<4x128xf32>, vector<8x128xf32> -> vector<8x128xf32>
    %c0_32 = arith.constant 0 : index
    %c0_33 = arith.constant 0 : index
    %c0_34 = arith.constant 0 : index
    %64 = vector.load %arg6[%c0_32, %c0_33, %c0_34] : memref<1x8x128xf32, #tpu.memory_space<vmem>>, vector<1x8x128xf32>
    %65 = vector.shape_cast %64 : vector<1x8x128xf32> to vector<8x128xf32>
    %66 = vector.shape_cast %63 : vector<8x128xf32> to vector<1x8x128xf32>
    tpu.vector_store %arg6[%c0_32, %c0_33, %c0_34], %66 {strides = array<i32>} : memref<1x8x128xf32, #tpu.memory_space<vmem>>, vector<1x8x128xf32>,
    return
  }
  func.func @transform_0(%arg0: i32, %arg1: i32, %arg2: i32) -> (i32, i32, i32, i32, i32) {
    %c0_i32 = arith.constant 0 : i32
    %c0_i32_0 = arith.constant 0 : i32
    %c0_i32_1 = arith.constant 0 : i32
    %c0_i32_2 = arith.constant 0 : i32
    return %arg0, %arg2, %c0_i32, %c0_i32_0, %c0_i32_1 : i32, i32, i32, i32, i32
  }
  func.func @transform_1(%arg0: i32, %arg1: i32, %arg2: i32) -> (i32, i32) {
    %c0_i32 = arith.constant 0 : i32
    %c0_i32_0 = arith.constant 0 : i32
    %c0_i32_1 = arith.constant 0 : i32
    return %c0_i32, %c0_i32_0 : i32, i32
  }
  func.func @transform_2(%arg0: i32, %arg1: i32, %arg2: i32) -> (i32, i32) {
    %c0_i32 = arith.constant 0 : i32
    %c0_i32_0 = arith.constant 0 : i32
    %c0_i32_1 = arith.constant 0 : i32
    return %c0_i32, %c0_i32_0 : i32, i32
  }
  func.func @transform_3(%arg0: i32, %arg1: i32, %arg2: i32) -> (i32, i32, i32) {
    %0 = arith.muli %arg2, %arg1 : i32
    %c0_i32 = arith.constant 0 : i32
    %c0_i32_0 = arith.constant 0 : i32
    return %arg0, %c0_i32, %0 : i32, i32, i32
  }
}

</mosaic_0001>

<llo_original>
// kernel: tpu_custom_call.1
$region0: #{tpu_custom_call.1}
  #allocation0 [shape = 'u32[]', space=smem, size = 0x4, offset = 0x4, fixed_abs, tag = 'smem constant byte address 0x4 - core index']
  #allocation1 [shape = 'u32[144,128]{1,0:T(1,128)}', space=vmem, size = 0x12000, scoped, tag = 'internal scratch']
  #allocation2 [shape = 'f32[1,1]{1,0:T(1,128)}', space=vmem, size = 0x200, scoped, tag = 'scratch operand']
  #allocation3 [shape = 'f32[1,1]{1,0:T(1,128)}', space=vmem, size = 0x200, scoped, tag = 'scratch operand']
  %s0 = inlined_call_operand.hbm [shape: f32[2,1,1,4,130], index: 0, kind: input, shape index: {}]
  %s1 = inlined_call_operand.vmem [shape: f32[4,7], index: 1, kind: input, shape index: {}]
  %s2 = inlined_call_operand.vmem [shape: f32[8,4], index: 2, kind: input, shape index: {}]
  %s3 = inlined_call_operand.hbm [shape: f32[2,8,128], index: 3, kind: output, shape index: {}]
  %s4 = sld [smem:[#allocation0]]
  $region49: #{tpu_custom_call.1} parent=0
    _
  %s6 = ssub.s32 1, %s4
  %s7 = scalar_select 0, %s6, %s4
  $region1: #{tpu_custom_call.1} parent=0
    #allocation4 [shape = 'u8[8192]{0}', space=vmem, size = 0x2000, scoped, tag = 'input window, operand 0']
    #allocation5 [shape = 's32[2]{0}', space=sflag, size = 0x8, scoped, tag = 'scoped memory for tpu_custom_call.1']
    #allocation6 [shape = 's32[2]{0}', space=sflag, size = 0x8, scoped, tag = 'scoped memory for tpu_custom_call.1']
    #allocation7 [shape = 'u8[8192]{0}', space=vmem, size = 0x2000, scoped, tag = 'output window, operand 0']
    %8 = vsyncpa [#allocation5], 0
    %s9 = scalar_lea.sflag [#allocation5], 1
    %10 = vsyncpa %s9, 0
    %11 = vsyncpa [#allocation6], 0
    %s12 = scalar_lea.sflag [#allocation6], 1
    %13 = vsyncpa %s12, 0
    loop: start=0, step=1, limit=4
    $region2: #{tpu_custom_call.1} parent=1 // loop_pre_header
      _
    $region3: #{tpu_custom_call.1} parent=1 // loop_header
      %s15 = sphi 0, %s19
      %p16 = scmp.ge.s32.totalorder %s15, 4
      %s22 = sphi 0, %s41
      %s23 = sphi 0, %s37
      %s24 = sphi 0, %s33
      %s25 = sphi 0, %s22
      %s26 = sphi 0, %s23
      %s27 = sphi 0, %s24
      %s28 = sphi 0, %s25
      %s29 = sphi 0, %s26
      %s30 = sphi 0, %s27
      %s46 = sphi 0, %s48
      %s49 = sphi 0, %s46
      %s50 = sphi 0, %s49
      %s66 = sphi 0, %s50
      %s70 = sphi 0, %s70
      %s72 = sphi 0, %s70
      %s73 = sphi 0, %s72
      %s87 = sphi 0, %s73
      %s91 = sphi 0, %s91
      %s93 = sphi 0, %s91
      %s94 = sphi 0, %s93
      %s108 = sphi 0, %s94
      %s118 = sphi 0, %s120
      %s121 = sphi 0, %s118
      %s122 = sphi 0, %s121
      %s138 = sphi 0, %s122
    $region4: #{tpu_custom_call.1} parent=1 // loop_header_branch
      %18 = sbr.rel (%p16) target = $region8
    $region5: #{tpu_custom_call.1} parent=1 // loop_body
      %s20 = ssub.s32 %s15, 1
      %s21 = ssub.s32 %s15, 2
      %s31 = sadd.s32 1, %s24
      %p32 = scmp.ge.s32.totalorder %s31, 1
      %s33 = scalar_select %p32, 0, %s31
      %s34 = sadd.s32 1, %s23
      %s35 = scalar_select %p32, %s34, %s23
      %p36 = scmp.ge.s32.totalorder %s35, 1
      %s37 = scalar_select %p36, 0, %s35
      %s38 = sadd.s32 1, %s22
      %s39 = scalar_select %p36, %s38, %s22
      %p40 = scmp.ge.s32.totalorder %s39, 2
      %s41 = scalar_select %p40, 0, %s39
      %s42 = ssub.s32 %s22, %s41
      %s43 = ssub.s32 %s24, %s33
      %s44 = sor.u32 %s42, %s43
      %p45 = scmp.eq.s32.totalorder %s44, 0
      %s47 = sadd.s32 %s46, 1
      %s48 = scalar_select %p45, %s46, %s47
      %p51 = pneg %p45
      %p52 = scmp.eq.s32.totalorder %s15, 1
      %p53 = por %p51, %p52
      %p54 = scmp.ne.s32.totalorder %s46, %s49
      %p55 = scmp.eq.s32.totalorder %s15, 0
      %p56 = por %p54, %p55
      %p57 = scmp.ne.s32.totalorder %s46, %s49
      %p58 = scmp.eq.s32.totalorder %s20, 1
      %p59 = por %p57, %p58
      %p60 = scmp.ne.s32.totalorder %s49, %s50
      %p61 = scmp.eq.s32.totalorder %s20, 0
      %p62 = por %p60, %p61
      %p63 = scmp.ne.s32.totalorder %s49, %s50
      %p64 = scmp.eq.s32.totalorder %s21, 1
      %p65 = por %p63, %p64
      %p67 = scmp.ne.s32.totalorder %s50, %s66
      %p68 = scmp.eq.s32.totalorder %s21, 0
      %p69 = por %p67, %p68
      %s71 = sadd.s32 %s70, 1
      %p74 = scmp.eq.s32.totalorder %s15, 1
      %p75 = scmp.ne.s32.totalorder %s70, %s72
      %p76 = scmp.eq.s32.totalorder %s15, 0
      %p77 = por %p75, %p76
      %p78 = scmp.ne.s32.totalorder %s70, %s72
      %p79 = scmp.eq.s32.totalorder %s20, 1
      %p80 = por %p78, %p79
      %p81 = scmp.ne.s32.totalorder %s72, %s73
      %p82 = scmp.eq.s32.totalorder %s20, 0
      %p83 = por %p81, %p82
      %p84 = scmp.ne.s32.totalorder %s72, %s73
      %p85 = scmp.eq.s32.totalorder %s21, 1
      %p86 = por %p84, %p85
      %p88 = scmp.ne.s32.totalorder %s73, %s87
      %p89 = scmp.eq.s32.totalorder %s21, 0
      %p90 = por %p88, %p89
      %s92 = sadd.s32 %s91, 1
      %p95 = scmp.eq.s32.totalorder %s15, 1
      %p96 = scmp.ne.s32.totalorder %s91, %s93
      %p97 = scmp.eq.s32.totalorder %s15, 0
      %p98 = por %p96, %p97
      %p99 = scmp.ne.s32.totalorder %s91, %s93
      %p100 = scmp.eq.s32.totalorder %s20, 1
      %p101 = por %p99, %p100
      %p102 = scmp.ne.s32.totalorder %s93, %s94
      %p103 = scmp.eq.s32.totalorder %s20, 0
      %p104 = por %p102, %p103
      %p105 = scmp.ne.s32.totalorder %s93, %s94
      %p106 = scmp.eq.s32.totalorder %s21, 1
      %p107 = por %p105, %p106
      %p109 = scmp.ne.s32.totalorder %s94, %s108
      %p110 = scmp.eq.s32.totalorder %s21, 0
      %p111 = por %p109, %p110
      %s112 = smul.u32 %s24, %s23
      %s113 = smul.u32 %s33, %s37
      %s114 = ssub.s32 %s22, %s41
      %s115 = ssub.s32 %s112, %s113
      %s116 = sor.u32 %s114, %s115
      %p117 = scmp.eq.s32.totalorder %s116, 0
      %s119 = sadd.s32 %s118, 1
      %s120 = scalar_select %p117, %s118, %s119
      %p123 = pneg %p117
      %p124 = scmp.eq.s32.totalorder %s15, 1
      %p125 = por %p123, %p124
      %p126 = scmp.ne.s32.totalorder %s118, %s121
      %p127 = scmp.eq.s32.totalorder %s15, 0
      %p128 = por %p126, %p127
      %p129 = scmp.ne.s32.totalorder %s118, %s121
      %p130 = scmp.eq.s32.totalorder %s20, 1
      %p131 = por %p129, %p130
      %p132 = scmp.ne.s32.totalorder %s121, %s122
      %p133 = scmp.eq.s32.totalorder %s20, 0
      %p134 = por %p132, %p133
      %p135 = scmp.ne.s32.totalorder %s121, %s122
      %p136 = scmp.eq.s32.totalorder %s21, 1
      %p137 = por %p135, %p136
      %p139 = scmp.ne.s32.totalorder %s122, %s138
      %p140 = scmp.eq.s32.totalorder %s21, 0
      %p141 = por %p139, %p140
      %p142 = scmp.le.s32.totalorder 1, %s15
      %p143 = scmp.lt.s32.totalorder %s15, 3
      %p144 = pnand %p142, %p143
      %p145 = pneg %p144
      // Predicated region
      $region9: #{tpu_custom_call.1} parent=5 // pred_check
        _
      $region10: #{tpu_custom_call.1} parent=5 // pred_check_branch
        %147 = sbr.rel (%p144) target = $region12
      $region11: #{tpu_custom_call.1} parent=5 // pred_region
        %s148 = ssub.s32 %s15, 1
        // Predicated region
        $region13: #{tpu_custom_call.1} parent=11 // pred_check
          %p149 = pneg %p83
        $region14: #{tpu_custom_call.1} parent=11 // pred_check_branch
          %151 = sbr.rel (%p149) target = $region16
        $region15: #{tpu_custom_call.1} parent=11 // pred_region
          _
        $region16: #{tpu_custom_call.1} parent=11 // pred_fallthru
          _
        // Predicated region
        $region17: #{tpu_custom_call.1} parent=11 // pred_check
          %p152 = pneg %p104
        $region18: #{tpu_custom_call.1} parent=11 // pred_check_branch
          %154 = sbr.rel (%p152) target = $region20
        $region19: #{tpu_custom_call.1} parent=11 // pred_region
          _
        $region20: #{tpu_custom_call.1} parent=11 // pred_fallthru
          _
      $region12: #{tpu_custom_call.1} parent=5 // pred_fallthru
        _
      %p155 = scmp.lt.s32.totalorder %s15, 2
      // Predicated region
      $region21: #{tpu_custom_call.1} parent=5 // pred_check
        %p156 = pneg %p155
      $region22: #{tpu_custom_call.1} parent=5 // pred_check_branch
        %158 = sbr.rel (%p156) target = $region24
      $region23: #{tpu_custom_call.1} parent=5 // pred_region
        // Predicated region
        $region25: #{tpu_custom_call.1} parent=23 // pred_check
          %p159 = pneg %p56
        $region26: #{tpu_custom_call.1} parent=23 // pred_check_branch
          %161 = sbr.rel (%p159) target = $region28
        $region27: #{tpu_custom_call.1} parent=23 // pred_region
          %s162 = sand.u32 %s46, 1
          %s163 = scalar_lea.sflag [#allocation5], %s162
          %s164 = sand.u32 %s46, 1
          %s165 = smul.addr %s164, 8
          %s166 = scalar_lea.vmem [#allocation4], %s165
          %s168 = ssub.s32 128, 128
          %169 = vsyncadd %s163, %s168
          %s170 = smul.addr %s24, 2
          %s171 = smul.addr %s22, 2
          %s172 = sadd.s32 %s170, %s171
          %s173 = smul.addr %s172, 64
          %s174 = scalar_lea.hbm %s0, %s173
          %s176 = sshll.u32 %s166, 4
          %s177 = int_to_ptr.vmem [resolvable:$true] %s176
          %179 = dma.hbm_to_vmem [thread:$0]  %s174, 128, %s177, %s163
        $region28: #{tpu_custom_call.1} parent=23 // pred_fallthru
          _
      $region24: #{tpu_custom_call.1} parent=5 // pred_fallthru
        _
      %p180 = scmp.le.s32.totalorder 1, %s15
      %p181 = scmp.lt.s32.totalorder %s15, 3
      %p182 = pnand %p180, %p181
      %p183 = pneg %p182
      // Predicated region
      $region29: #{tpu_custom_call.1} parent=5 // pred_check
        _
      $region30: #{tpu_custom_call.1} parent=5 // pred_check_branch
        %185 = sbr.rel (%p182) target = $region32
      $region31: #{tpu_custom_call.1} parent=5 // pred_region
        %s186 = ssub.s32 %s15, 1
        %s187 = sand.u32 %s49, 1
        %s188 = scalar_lea.sflag [#allocation5], %s187
        %s189 = sand.u32 %s49, 1
        %s190 = smul.addr %s189, 8
        %s191 = scalar_lea.vmem [#allocation4], %s190
        // Predicated region
        $region33: #{tpu_custom_call.1} parent=31 // pred_check
          %p192 = pneg %p62
        $region34: #{tpu_custom_call.1} parent=31 // pred_check_branch
          %194 = sbr.rel (%p192) target = $region36
        $region35: #{tpu_custom_call.1} parent=31 // pred_region
          %195 = dma.done %s188, 128
        $region36: #{tpu_custom_call.1} parent=31 // pred_fallthru
          _
        %s196 = sand.u32 %s49, 1
        %s197 = scalar_lea.sflag [#allocation5], %s196
        %s198 = sand.u32 %s49, 1
        %s199 = smul.addr %s198, 8
        %s200 = scalar_lea.vmem [#allocation4], %s199
        %p201 = pneg %p62
        %p202 = pneg %p59
        %p203 = pneg %p83
        %p204 = pneg %p80
        %p205 = pneg %p104
        %p206 = pneg %p101
        %p207 = pneg %p134
        %p208 = pneg %p131
        %s209 = sand.u32 %s121, 1
        %s210 = scalar_lea.sflag [#allocation6], %s209
        %s211 = sand.u32 %s121, 1
        %s212 = smul.addr %s211, 8
        %s213 = scalar_lea.vmem [#allocation7], %s212
        %s214 = smul.u32 %s27, %s26
        %v215 = vld [vmem:[%s191] sm:$0xf]
        %v216 = vld [vmem:[%s1] sm:$0xf]
        %218 = vset.pattern.permute.xlu0 0
        %219 = vperm.xlu0 %218, %v216
        %v220 = vpop.permute.xlu0 %219
        %v222 = vmul.f32 %v220, %v215
        %v223 = vld [vmem:[%s191] sm:$0xff]
        %224 = vset.pattern.permute.xlu0 1
        %225 = vperm.xlu0 %224, %v216
        %v226 = vpop.permute.xlu0 %225
        %v229 = vcombine.high %v223, %v223
        %230 = vrot.lane.b32.xlu0 %v223, 127
        %v231 = vpop.permute.xlu0 %230
        %232 = vrot.lane.b32.xlu0 %v229, 127
        %v233 = vpop.permute.xlu0 %232
        %vm234 = vcmask 1039360
        %v235 = vsel %vm234, %v231, %v233
        %v237 = vmul.f32 %v226, %v235
        %v238 = vadd.f32 %v222, %v237
        %v239 = vld [vmem:[%s191] sm:$0xff]
        %v240 = vld [vmem:[%s1] sm:$0xf]
        %242 = vset.pattern.permute.xlu0 2
        %243 = vperm.xlu0 %242, %v240
        %v244 = vpop.permute.xlu0 %243
        %v247 = vcombine.high %v239, %v239
        %248 = vrot.lane.b32.xlu0 %v239, 126
        %v249 = vpop.permute.xlu0 %248
        %250 = vrot.lane.b32.xlu0 %v247, 126
        %v251 = vpop.permute.xlu0 %250
        %vm252 = vcmask 1031168
        %v253 = vsel %vm252, %v249, %v251
        %v255 = vmul.f32 %v244, %v253
        %v256 = vadd.f32 %v238, %v255
        %v257 = vld [vmem:[%s1] sm:$0xf]
        %259 = vset.pattern.permute.xlu0 3
        %260 = vperm.xlu0 %259, %v257
        %v261 = vpop.permute.xlu0 %260
        %v263 = vadd.f32 %v256, %v261
        %vm264 = vcmp.gt.f32.partialorder %v263, 0.0
        %265 = vset.pattern.permute.xlu0 6
        %266 = vperm.xlu0 %265, %v257
        %v267 = vpop.permute.xlu0 %266
        %v269 = vmul.f32 %v267, %v263
        %v270 = vsel %vm264, %v263, %v269
        %s271 = smul.u32 %s27, 128
        %v272 = vlaneseq
        %v273 = vand.u32 %v272, 127
        %v274 = vstv %s271
        %v275 = vadd.s32 %v274, %v273
        %vm276 = vcmp.lt.s32.totalorder %v275, 30
        %v277 = vsel %vm276, 1, 0
        %vm278 = vcmp.eq.s32.totalorder %v277, 1
        %v279 = vsel %vm278, %v270, 0.0
        %vm280 = vcmask 1043456
        %v281 = vsel %vm280, %v279, 0.0
        %282 = vadd.xlane.f32.xlu0 %v281
        %v283 = vpop.xlane.xlu0 %282
        %v284 = vrot.slane %v283, 4
        %v285 = vadd.f32 %v283, %v284
        %v286 = vrot.slane %v285, 2
        %v287 = vadd.f32 %v285, %v286
        %v288 = vrot.slane %v287, 1
        %v289 = vadd.f32 %v287, %v288
        %s290 = vtos %v289
        %v291 = vmul.f32 %v279, %v279
        %v292 = vsel %vm280, %v291, 0.0
        %293 = vadd.xlane.f32.xlu0 %v292
        %v294 = vpop.xlane.xlu0 %293
        %v295 = vrot.slane %v294, 4
        %v296 = vadd.f32 %v294, %v295
        %v297 = vrot.slane %v296, 2
        %v298 = vadd.f32 %v296, %v297
        %v299 = vrot.slane %v298, 1
        %v300 = vadd.f32 %v298, %v299
        %s301 = vtos %v300
        %v302 = vrcp.pop 120.0
        %s303 = vtos %v302
        %s304 = smul.f32 %s290, %s303
        %v305 = vrcp.pop 120.0
        %s306 = vtos %v305
        %s307 = smul.f32 %s301, %s306
        %s308 = smul.f32 %s304, %s304
        %s309 = ssub.f32 %s307, %s308
        %s310 = smax.f32 %s309, 0.0
        %s311 = sadd.f32 %s310, 1e-08
        %v312 = vstv %s311
        %v313 = vrsqrt.pop %v312
        %s314 = vtos %v313
        %v315 = vstv %s304
        %v316 = vsub.f32 %v270, %v315
        %v317 = vstv %s314
        %v318 = vmul.f32 %v316, %v317
        %319 = vset.pattern.permute.xlu0 4
        %320 = vperm.xlu0 %319, %v257
        %v321 = vpop.permute.xlu0 %320
        %v323 = vmul.f32 %v318, %v321
        %324 = vset.pattern.permute.xlu0 5
        %325 = vperm.xlu0 %324, %v257
        %v326 = vpop.permute.xlu0 %325
        %v328 = vadd.f32 %v323, %v326
        %v329 = vld [vmem:[%s2] sm:$0xff]
        %vm330 = vcmask 31744
        %v332 = vsel %vm330, %v329, 0
        %v335 = vsel %vm280, %v328, 0
        %337 = vmatprep.subr.mxu0 0.0
        %338 = vmatpush1.msra.mxu0 %v335
        %339 = vmatprep.subr.mxu0 0.0
        %340 = vmatpush1.msra.mxu0 0.0
        %341 = vmatprep.subr.mxu0 0.0
        %342 = vmatpush1.msra.mxu0 0.0
        %343 = vmatprep.subr.mxu0 0.0
        %344 = vmatpush1.msra.mxu0 0.0
        %345 = vmatprep.subr.mxu0 0.0
        %346 = vmatpush1.msra.mxu0 0.0
        %347 = vmatprep.subr.mxu0 0.0
        %348 = vmatpush1.msra.mxu0 0.0
        %349 = vmatprep.subr.mxu0 0.0
        %350 = vmatpush1.msra.mxu0 0.0
        %351 = vmatprep.subr.mxu0 0.0
        %352 = vmatpush1.msra.mxu0 0.0
        %353 = vmatprep.subr.mxu0 0.0
        %354 = vmatpush1.msra.mxu0 0.0
        %355 = vmatprep.subr.mxu0 0.0
        %356 = vmatpush1.msra.mxu0 0.0
        %357 = vmatprep.subr.mxu0 0.0
        %358 = vmatpush1.msra.mxu0 0.0
        %359 = vmatprep.subr.mxu0 0.0
        %360 = vmatpush1.msra.mxu0 0.0
        %361 = vmatprep.subr.mxu0 0.0
        %362 = vmatpush1.msra.mxu0 0.0
        %363 = vmatprep.subr.mxu0 0.0
        %364 = vmatpush1.msra.mxu0 0.0
        %365 = vmatprep.subr.mxu0 0.0
        %366 = vmatpush1.msra.mxu0 0.0
        %367 = vmatprep.subr.mxu0 0.0
        %368 = vmatpush1.msra.mxu0 0.0
        %369 = vmatprep.subr.mxu0 0.0
        %370 = vmatpush1.msra.mxu0 0.0
        %371 = vmatprep.subr.mxu0 0.0
        %372 = vmatpush1.msra.mxu0 0.0
        %373 = vmatprep.subr.mxu0 0.0
        %374 = vmatpush1.msra.mxu0 0.0
        %375 = vmatprep.subr.mxu0 0.0
        %376 = vmatpush1.msra.mxu0 0.0
        %377 = vmatprep.subr.mxu0 0.0
        %378 = vmatpush1.msra.mxu0 0.0
        %379 = vmatprep.subr.mxu0 0.0
        %380 = vmatpush1.msra.mxu0 0.0
        %381 = vmatprep.subr.mxu0 0.0
        %382 = vmatpush1.msra.mxu0 0.0
        %383 = vmatprep.subr.mxu0 0.0
        %384 = vmatpush1.msra.mxu0 0.0
        %385 = vmatprep.subr.mxu0 0.0
        %386 = vmatpush1.msra.mxu0 0.0
        %387 = vmatprep.subr.mxu0 0.0
        %388 = vmatpush1.msra.mxu0 0.0
        %389 = vmatprep.subr.mxu0 0.0
        %390 = vmatpush1.msra.mxu0 0.0
        %391 = vmatprep.subr.mxu0 0.0
        %392 = vmatpush1.msra.mxu0 0.0
        %393 = vmatprep.subr.mxu0 0.0
        %394 = vmatpush1.msra.mxu0 0.0
        %395 = vmatprep.subr.mxu0 0.0
        %396 = vmatpush1.msra.mxu0 0.0
        %397 = vmatprep.subr.mxu0 0.0
        %398 = vmatpush1.msra.mxu0 0.0
        %399 = vmatprep.subr.mxu0 0.0
        %400 = vmatpush1.msra.mxu0 0.0
        %401 = vmatprep.mubr.f32.mxu0 0.0
        %402 = vmatmul.mubr.f32.gmra.mrb[0].mxu0 %v332
        %v403 = vpop.f32.mrb[0].mxu0
        %v404 = vadd.f32 0.0, %v403
        %v405 = vpop.f32.mrb[0].mxu0
        %406 = vdwg.mxu0
        %407 = vst [vmem:[%s213] sm:$0xff] %v404
        %s408 = sand.u32 %s121, 1
        %s409 = scalar_lea.sflag [#allocation6], %s408
        %s410 = sand.u32 %s121, 1
        %s411 = smul.addr %s410, 8
        %s412 = scalar_lea.vmem [#allocation7], %s411
        // Predicated region
        $region37: #{tpu_custom_call.1} parent=31 // pred_check
          %p413 = pneg %p131
        $region38: #{tpu_custom_call.1} parent=31 // pred_check_branch
          %415 = sbr.rel (%p413) target = $region40
        $region39: #{tpu_custom_call.1} parent=31 // pred_region
          %s416 = smul.u32 %s27, %s26
          %s418 = ssub.s32 128, 128
          %419 = vsyncadd %s409, %s418
          %s420 = sadd.s32 %s416, %s25
          %s421 = smul.addr %s420, 128
          %s422 = scalar_lea.hbm %s3, %s421
          %s424 = sshll.u32 %s412, 4
          %s425 = int_to_ptr.vmem [resolvable:$true] %s424
          %427 = dma.vmem_to_hbm [thread:$0]  %s425, 128, %s422, %s409
        $region40: #{tpu_custom_call.1} parent=31 // pred_fallthru
          _
      $region32: #{tpu_custom_call.1} parent=5 // pred_fallthru
        _
      %p428 = scmp.le.s32.totalorder 2, %s15
      // Predicated region
      $region41: #{tpu_custom_call.1} parent=5 // pred_check
        %p429 = pneg %p428
      $region42: #{tpu_custom_call.1} parent=5 // pred_check_branch
        %431 = sbr.rel (%p429) target = $region44
      $region43: #{tpu_custom_call.1} parent=5 // pred_region
        %s432 = ssub.s32 %s15, 2
        // Predicated region
        $region45: #{tpu_custom_call.1} parent=43 // pred_check
          %p433 = pneg %p137
        $region46: #{tpu_custom_call.1} parent=43 // pred_check_branch
          %435 = sbr.rel (%p433) target = $region48
        $region47: #{tpu_custom_call.1} parent=43 // pred_region
          %s436 = sand.u32 %s122, 1
          %s437 = scalar_lea.sflag [#allocation6], %s436
          %s438 = sand.u32 %s122, 1
          %s439 = smul.addr %s438, 8
          %s440 = scalar_lea.vmem [#allocation7], %s439
          %441 = dma.done %s437, 128
        $region48: #{tpu_custom_call.1} parent=43 // pred_fallthru
          _
      $region44: #{tpu_custom_call.1} parent=5 // pred_fallthru
        _
    $region6: #{tpu_custom_call.1} parent=1 // loop_footer
      %s19 = sadd.s32 1, %s15
    $region7: #{tpu_custom_call.1} parent=1 // loop_footer_branch
      %14 = sbr.rel target = $region3
    $region8: #{tpu_custom_call.1} parent=1 // loop_exit
      _
    %442 = vsyncpa [#allocation5], 1
    %s443 = scalar_lea.sflag [#allocation5], 1
    %444 = vsyncpa %s443, 1
    %445 = vsyncpa [#allocation6], 1
    %s446 = scalar_lea.sflag [#allocation6], 1
    %447 = vsyncpa %s446, 1

</llo_original>
